<compile_context>
chip_gen: v5e
topology: v5e:2x2
jax: 0.10.0
libtpu: 0.0.40
codegen_flags: <defaults>
</compile_context>

<pallas_src>
import functools

import jax
import jax.numpy as jnp
from jax.experimental import pallas as pl
from jax.experimental.pallas import tpu as pltpu

EPS = 1e-5  # nn.BatchNorm2d default


# ---------------------------------------------------------------------------
# Kernels
# ---------------------------------------------------------------------------

def _affine_pair(ab_ref, tc, resident):
    """Slice the current channel tile out of a (2N, C, 1) affine tensor.

    Returns (a, b), each (N, tc, 1) in f32.  When `resident` the full tensor
    is grid-resident in VMEM and we slice the sublane (channel) axis with a
    dynamic, 8-aligned offset; otherwise the BlockSpec already delivered the
    tile and the slice is a static full-extent read (zero cost).
    """
    if resident:
        c0 = pl.program_id(0) * tc
        if tc % 8 == 0:
            c0 = pl.multiple_of(c0, 8)
    else:
        c0 = 0
    ab = ab_ref[:, pl.ds(c0, tc), :].astype(jnp.float32)   # (2N, tc, 1)
    n = ab.shape[0] // 2
    return ab[:n], ab[n:]


def _cbn_fused_kernel(x_ref, gb_ref, o_ref, *, tc, gb_resident):
    """Single pass: per-channel batch-norm stats + conditional affine."""
    # x_ref: (N, tc, HW)   gb_ref: (2N, C or tc, 1)   o_ref: (N, tc, HW)
    x = x_ref[...].astype(jnp.float32)
    n, _, hw = x.shape
    inv_count = 1.0 / float(n * hw)

    mean = jnp.sum(x, axis=(0, 2), keepdims=True) * inv_count       # (1, tc, 1)
    xm = x - mean                                                    # centered
    var = jnp.sum(xm * xm, axis=(0, 2), keepdims=True) * inv_count  # biased
    inv_std = jax.lax.rsqrt(var + EPS)                               # (1, tc, 1)

    gamma, beta = _affine_pair(gb_ref, tc, gb_resident)              # (N, tc, 1)
    # out = gamma * (x - mean) * inv_std + beta  ->  one fused FMA on the bulk.
    o_ref[...] = (xm * (gamma * inv_std) + beta).astype(o_ref.dtype)


def _cbn_stats_kernel(x_ref, s_ref):
    """Two-pass, pass 1: accumulate per-channel sum / sum-of-squares (f32)."""
    # x_ref: (N, tc, thw)   s_ref: (2, tc, 1) accumulator, resident over HW axis
    @pl.when(pl.program_id(1) == 0)
    def _():
        s_ref[...] = jnp.zeros_like(s_ref)

    x = x_ref[...].astype(jnp.float32)
    s_ref[0] += jnp.sum(jnp.sum(x, axis=2, keepdims=True), axis=0)      # (tc, 1)
    s_ref[1] += jnp.sum(jnp.sum(x * x, axis=2, keepdims=True), axis=0)  # (tc, 1)


def _cbn_apply_kernel(x_ref, ss_ref, o_ref, *, tc, ss_resident):
    """Two-pass, pass 2: out = x * scale + shift (per (n, c))."""
    scale, shift = _affine_pair(ss_ref, tc, ss_resident)             # (N, tc, 1)
    x = x_ref[...].astype(jnp.float32)
    o_ref[...] = (x * scale + shift).astype(o_ref.dtype)


# ---------------------------------------------------------------------------
# Tiling / budget heuristics
# ---------------------------------------------------------------------------

def _vmem_capacity_bytes():
    try:
        cap = getattr(pltpu.get_tpu_info(), "vmem_capacity_bytes", None)
        if cap:
            return int(cap)
    except Exception:
        pass
    return 64 * 1024 * 1024  # conservative: v7x has 64 MiB per TensorCore


def _sublane_pack(itemsize):
    # f32 tiles as (8,128), bf16 as (16,128), int8/fp8 as (32,128).
    return max(8, 8 * (4 // max(1, itemsize)))


def _pick_channel_tile(C, fits):
    """Largest fitting tile; prefer >=2 (ideally even) grid steps for megacore."""
    best = max(fits)
    multi = [t for t in fits if C // t >= 2]
    if multi:
        even = [t for t in multi if (C // t) % 2 == 0]
        best = max(even) if even else max(multi)
    return best


def _choose_tiles(N, C, HW, itemsize, budget_bytes, sub):
    """Pick (tc, thw).  thw == HW selects the fused single-pass kernel."""
    if C % sub == 0:
        ct_cands = [t for t in range(sub, C + 1, sub) if C % t == 0]
    else:
        ct_cands = [C]  # full channel extent (exempt from the /8 block rule)
    # Lane-dense HW tiles: prefer full HW (single pass), then /128 divisors.
    hw_cands = [HW] + sorted(
        (t for t in range(128, HW, 128) if HW % t == 0), reverse=True)
    for thw in hw_cands:
        fits = [t for t in ct_cands if N * t * thw * itemsize <= budget_bytes]
        if fits:
            return _pick_channel_tile(C, fits), thw
    # TODO(synk): nothing fits the budget (huge N, or HW with no multiple-of-128
    # divisor); fall back to minimum tiles and rely on the vmem_limit headroom.
    return min(ct_cands), hw_cands[-1]


# ---------------------------------------------------------------------------
# Wrapper
# ---------------------------------------------------------------------------

def conditional_batch_norm_2d(x, y, embed_weight, num_features, *,
                              block_budget_bytes=None, gb_resident=None):
    """x: (N, C, H, W); y: (N,) int; embed_weight: (num_classes, 2*C)."""
    N, C, H, W = x.shape
    assert C == num_features
    HW = H * W

    # Tiny XLA glue: embedding row gather + gamma/beta split.  No padding of x.
    emb = embed_weight[y].astype(jnp.float32)                # (N, 2C)
    gamma, beta = emb[:, :C], emb[:, C:]                     # (N, C) each
    x3 = x.reshape(N, C, HW)                                 # free reshape

    itemsize = jnp.dtype(x.dtype).itemsize
    sub = _sublane_pack(itemsize)
    vmem_limit = min(_vmem_capacity_bytes() * 3 // 4, 100 * 1024 * 1024)
    if block_budget_bytes is None:
        block_budget_bytes = min(8 * 1024 * 1024, vmem_limit // 8)

    tc, thw = _choose_tiles(N, C, HW, itemsize, block_budget_bytes, sub)
    n_ct = C // tc

    # Grid-resident gamma/beta only when the lane-padded VMEM copy is small;
    # with a single channel step residency is moot, so use the static path.
    gb_padded_bytes = 2 * N * (-(-C // 8) * 8) * 128 * 4
    if gb_resident is None:
        gb_resident = gb_padded_bytes <= (2 * 1024 * 1024)
    gb_resident = bool(gb_resident) and n_ct > 1

    cparams = functools.partial(pltpu.CompilerParams,
                                vmem_limit_bytes=vmem_limit)

    if thw == HW:
        # -------- fused single-pass path: 1 read + 1 write of HBM --------
        gb = jnp.concatenate([gamma, beta], axis=0)[..., None]      # (2N, C, 1)
        if gb_resident:
            gb_spec = pl.BlockSpec((2 * N, C, 1), lambda i: (0, 0, 0))
        else:
            gb_spec = pl.BlockSpec((2 * N, tc, 1), lambda i: (0, i, 0))
        out3 = pl.pallas_call(
            functools.partial(_cbn_fused_kernel, tc=tc, gb_resident=gb_resident),
            out_shape=jax.ShapeDtypeStruct((N, C, HW), x.dtype),
            grid=(n_ct,),
            in_specs=[pl.BlockSpec((N, tc, HW), lambda i: (0, i, 0)), gb_spec],
            out_specs=pl.BlockSpec((N, tc, HW), lambda i: (0, i, 0)),
            compiler_params=cparams(dimension_semantics=("parallel",)),
        )(x3, gb)
        return out3.reshape(N, C, H, W)

    # -------- two-pass path (full-HW block does not fit the VMEM budget) -----
    n_ht = HW // thw

    # Pass 1: per-channel sum / sum-sq, accumulated over HW tiles (f32).
    stats = pl.pallas_call(
        _cbn_stats_kernel,
        out_shape=jax.ShapeDtypeStruct((2, C, 1), jnp.float32),
        grid=(n_ct, n_ht),
        in_specs=[pl.BlockSpec((N, tc, thw), lambda c, h: (0, c, h))],
        out_specs=pl.BlockSpec((2, tc, 1), lambda c, h: (0, c, 0)),
        compiler_params=cparams(dimension_semantics=("parallel", "arbitrary")),
    )(x3)

    # Tiny XLA glue on (N, C): fold BN stats + gamma/beta into scale/shift.
    count = float(N * HW)
    mean = stats[0, :, 0] / count                                   # (C,)
    var = jnp.maximum(stats[1, :, 0] / count - mean * mean, 0.0)    # biased
    inv_std = jax.lax.rsqrt(var + EPS)
    scale = gamma * inv_std[None, :]                                # (N, C)
    shift = beta - mean[None, :] * scale                            # (N, C)
    ss = jnp.concatenate([scale, shift], axis=0)[..., None]         # (2N, C, 1)

    if gb_resident:
        ss_spec = pl.BlockSpec((2 * N, C, 1), lambda c, h: (0, 0, 0))
    else:
        ss_spec = pl.BlockSpec((2 * N, tc, 1), lambda c, h: (0, c, 0))

    # Pass 2: fused scale/shift, fully parallel over both grid axes.
    out3 = pl.pallas_call(
        functools.partial(_cbn_apply_kernel, tc=tc, ss_resident=gb_resident),
        out_shape=jax.ShapeDtypeStruct((N, C, HW), x.dtype),
        grid=(n_ct, n_ht),
        in_specs=[pl.BlockSpec((N, tc, thw), lambda c, h: (0, c, h)), ss_spec],
        out_specs=pl.BlockSpec((N, tc, thw), lambda c, h: (0, c, h)),
        compiler_params=cparams(dimension_semantics=("parallel", "parallel")),
    )(x3, ss)
    return out3.reshape(N, C, H, W)


# ---------------------------------------------------------------------------
# Reference + tests
# ---------------------------------------------------------------------------

def _reference(x, y, embed_weight, num_features):
    """Pure-JAX reference mirroring the PyTorch forward (training-mode BN)."""
    mean = jnp.mean(x, axis=(0, 2, 3), keepdims=True)
    var = jnp.mean((x - mean) ** 2, axis=(0, 2, 3), keepdims=True)
    x_hat = (x - mean) / jnp.sqrt(var + EPS)
    emb = embed_weight[y]
    gamma = emb[:, :num_features][:, :, None, None]
    beta = emb[:, num_features:][:, :, None, None]
    return gamma * x_hat + beta


def _make_inputs(key, N, C, H, W, num_classes):
    kx, ky, kw = jax.random.split(key, 3)
    x = jax.random.normal(kx, (N, C, H, W), dtype=jnp.float32)
    y = jax.random.randint(ky, (N,), 0, num_classes, dtype=jnp.int32)
    # Match the module's __init__: gamma half ~ N(1, 0.02), beta half = 0.
    gamma_part = 1.0 + 0.02 * jax.random.normal(kw, (num_classes, C), jnp.float32)
    beta_part = jnp.zeros((num_classes, C), jnp.float32)
    embed_weight = jnp.concatenate([gamma_part, beta_part], axis=1)  # (nc, 2C)
    return x, y, embed_weight


if __name__ == "__main__":
    key = jax.random.PRNGKey(0)
    num_classes = 10

    # (name, (N, C, H, W), kwargs) — covers: full-C single block, channel-tiled
    # grid with resident affine, channel-tiled grid with blocked affine, and the
    # forced two-pass (HW-tiled) fallback.
    cases = [
        ("single_pass_full_C", (2, 4, 16, 16), {}),
        ("single_pass_tiled_resident", (2, 16, 16, 16), {}),
        ("single_pass_tiled_blocked", (2, 16, 16, 16), {"gb_resident": False}),
        ("two_pass_hw_tiled", (2, 4, 16, 16), {"block_budget_bytes": 4096}),
    ]

    for idx, (name, (N, C, H, W), kwargs) in enumerate(cases):
        x, y, embed_weight = _make_inputs(jax.random.fold_in(key, idx),
                                          N, C, H, W, num_classes)
        out = conditional_batch_norm_2d(x, y, embed_weight, C, **kwargs)
        out = jax.block_until_ready(out)
        ref = _reference(x, y, embed_weight, C)
        assert out.shape == (N, C, H, W), name
        assert jnp.allclose(out, ref, atol=1e-4, rtol=1e-4), f"mismatch: {name}"

    print("KERNEL_OK")
</pallas_src>

<mosaic_0001>
module attributes {stable_mosaic.version = 11 : i64} {
  func.func @_cbn_fused_kernel(%arg0: i32, %arg1: memref<2x4x256xf32, #tpu.memory_space<vmem>>, %arg2: memref<4x4x1xf32, #tpu.memory_space<vmem>>, %arg3: memref<2x4x256xf32, #tpu.memory_space<vmem>>) attributes {dimension_semantics = [#tpu.dimension_semantics<parallel>], iteration_bounds = array<i64: 1>, scalar_prefetch = 0 : i64, scratch_operands = 0 : i64, tpu.core_type = #tpu.core_type<tc>, window_params = [{transform_indices = @transform_0, window_bounds = array<i64: 2, 4, 256>}, {transform_indices = @transform_1, window_bounds = array<i64: 4, 4, 1>}, {transform_indices = @transform_2, window_bounds = array<i64: 2, 4, 256>}]} {
    %c0 = arith.constant 0 : index
    %c0_0 = arith.constant 0 : index
    %c0_1 = arith.constant 0 : index
    %0 = vector.load %arg1[%c0, %c0_0, %c0_1] : memref<2x4x256xf32, #tpu.memory_space<vmem>>, vector<2x4x256xf32>
    %cst = arith.constant dense<0.000000e+00> : vector<4xf32>
    %1 = vector.multi_reduction <add>, %0, %cst [0, 2] : vector<2x4x256xf32> to vector<4xf32>
    %2 = vector.shape_cast %1 : vector<4xf32> to vector<1x4x1xf32>
    %cst_2 = arith.constant 0.001953125 : f32
    %3 = vector.broadcast %cst_2 : f32 to vector<1x4x1xf32>
    %4 = arith.mulf %2, %3 : vector<1x4x1xf32>
    %5 = vector.broadcast %4 : vector<1x4x1xf32> to vector<2x4x256xf32>
    %6 = arith.subf %0, %5 : vector<2x4x256xf32>
    %7 = arith.mulf %6, %6 : vector<2x4x256xf32>
    %cst_3 = arith.constant dense<0.000000e+00> : vector<4xf32>
    %8 = vector.multi_reduction <add>, %7, %cst_3 [0, 2] : vector<2x4x256xf32> to vector<4xf32>
    %9 = vector.shape_cast %8 : vector<4xf32> to vector<1x4x1xf32>
    %cst_4 = arith.constant 0.001953125 : f32
    %10 = vector.broadcast %cst_4 : f32 to vector<1x4x1xf32>
    %11 = arith.mulf %9, %10 : vector<1x4x1xf32>
    %cst_5 = arith.constant 9.99999974E-6 : f32
    %12 = vector.broadcast %cst_5 : f32 to vector<1x4x1xf32>
    %13 = arith.addf %11, %12 : vector<1x4x1xf32>
    %14 = math.rsqrt %13 : vector<1x4x1xf32>
    %c0_6 = arith.constant 0 : index
    %c0_7 = arith.constant 0 : index
    %c0_8 = arith.constant 0 : index
    %15 = vector.load %arg2[%c0_6, %c0_7, %c0_8] : memref<4x4x1xf32, #tpu.memory_space<vmem>>, vector<4x4x1xf32>
    %16 = vector.extract_strided_slice %15 {offsets = [0, 0, 0], sizes = [2, 4, 1], strides = [1, 1, 1]} : vector<4x4x1xf32> to vector<2x4x1xf32>
    %17 = vector.extract_strided_slice %15 {offsets = [2, 0, 0], sizes = [2, 4, 1], strides = [1, 1, 1]} : vector<4x4x1xf32> to vector<2x4x1xf32>
    %18 = vector.broadcast %14 : vector<1x4x1xf32> to vector<2x4x1xf32>
    %19 = arith.mulf %16, %18 : vector<2x4x1xf32>
    %20 = vector.broadcast %19 : vector<2x4x1xf32> to vector<2x4x256xf32>
    %21 = arith.mulf %6, %20 : vector<2x4x256xf32>
    %22 = vector.broadcast %17 : vector<2x4x1xf32> to vector<2x4x256xf32>
    %23 = arith.addf %21, %22 : vector<2x4x256xf32>
    %c0_9 = arith.constant 0 : index
    %c0_10 = arith.constant 0 : index
    %c0_11 = arith.constant 0 : index
    %24 = vector.load %arg3[%c0_9, %c0_10, %c0_11] : memref<2x4x256xf32, #tpu.memory_space<vmem>>, vector<2x4x256xf32>
    tpu.vector_store %arg3[%c0_9, %c0_10, %c0_11], %23 {strides = array<i32>} : memref<2x4x256xf32, #tpu.memory_space<vmem>>, vector<2x4x256xf32>,
    return
  }
  func.func @transform_0(%arg0: i32) -> (i32, i32, i32) {
    %c0_i32 = arith.constant 0 : i32
    %c0_i32_0 = arith.constant 0 : i32
    %c0_i32_1 = arith.constant 0 : i32
    return %c0_i32, %arg0, %c0_i32_0 : i32, i32, i32
  }
  func.func @transform_1(%arg0: i32) -> (i32, i32, i32) {
    %c0_i32 = arith.constant 0 : i32
    %c0_i32_0 = arith.constant 0 : i32
    %c0_i32_1 = arith.constant 0 : i32
    return %c0_i32, %arg0, %c0_i32_0 : i32, i32, i32
  }
  func.func @transform_2(%arg0: i32) -> (i32, i32, i32) {
    %c0_i32 = arith.constant 0 : i32
    %c0_i32_0 = arith.constant 0 : i32
    %c0_i32_1 = arith.constant 0 : i32
    return %c0_i32, %arg0, %c0_i32_0 : i32, i32, i32
  }
}

</mosaic_0001>

<llo_original>
// kernel: tpu_custom_call.1
$region0: #{tpu_custom_call.1}
  #allocation0 [shape = 'u32[]', space=smem, size = 0x4, offset = 0x4, fixed_abs, tag = 'smem constant byte address 0x4 - core index']
  #allocation1 [shape = 'u32[72,128]{1,0:T(1,128)}', space=vmem, size = 0x9000, scoped, tag = 'internal scratch']
  %s0 = inlined_call_operand.vmem [shape: f32[2,4,256], index: 0, kind: input, shape index: {}]
  %s1 = inlined_call_operand.vmem [shape: f32[4,4,1], index: 1, kind: input, shape index: {}]
  %s2 = inlined_call_operand.hbm [shape: f32[2,4,256], index: 2, kind: output, shape index: {}]
  %s3 = sld [smem:[#allocation0]]
  $region18: #{tpu_custom_call.1} parent=0
    _
  %s5 = ssub.s32 1, %s3
  %s6 = scalar_select 0, %s5, %s3
  $region1: #{tpu_custom_call.1} parent=0
    #allocation2 [shape = 'u8[8192]{0}', space=vmem, size = 0x2000, scoped, tag = 'output window, operand 0, single buffered']
    #allocation3 [shape = 's32[1]{0}', space=sflag, size = 0x4, scoped, tag = 'scoped memory for tpu_custom_call.1']
    %7 = vsyncpa [#allocation3], 0
    // Predicated region
    $region2: #{tpu_custom_call.1} parent=1 // pred_check
      _
    $region3: #{tpu_custom_call.1} parent=1 // pred_check_branch
      %9 = sbr.rel (0) target = $region5
    $region4: #{tpu_custom_call.1} parent=1 // pred_region
      _
    $region5: #{tpu_custom_call.1} parent=1 // pred_fallthru
      _
    // Predicated region
    $region6: #{tpu_custom_call.1} parent=1 // pred_check
      _
    $region7: #{tpu_custom_call.1} parent=1 // pred_check_branch
      %11 = sbr.rel (0) target = $region9
    $region8: #{tpu_custom_call.1} parent=1 // pred_region
      _
    $region9: #{tpu_custom_call.1} parent=1 // pred_fallthru
      _
    %v12 = vld [vmem:[%s0] sm:$0xff]
    %v13 = vld [vmem:[%s0 + $0x8] sm:$0xff]
    %16 = vst [vmem:[#allocation1] ss:$2 sm:$0xff] %v12
    %v17 = vld.sshfl [vmem:[#allocation1] sm:$0xff pattern:$0x75316420]
    %v18 = vld.sshfl [vmem:[#allocation1 + $0x8] sm:$0xff pattern:$0x75316420]
    %s19 = scalar_lea.vmem [#allocation1], 16
    %20 = vst [vmem:[%s19] ss:$2 sm:$0xff] %v13
    %v21 = vld.sshfl [vmem:[#allocation1 + $0x10] sm:$0xff pattern:$0x75316420]
    %v22 = vld.sshfl [vmem:[#allocation1 + $0x18] sm:$0xff pattern:$0x75316420]
    %vm27 = vcmask 1043456
    %v28 = vsel %vm27, %v17, 0.0
    %v29 = vsel %vm27, %v18, 0.0
    %v30 = vadd.f32 %v28, %v29
    %v31 = vsel %vm27, %v21, 0.0
    %v32 = vadd.f32 %v30, %v31
    %v33 = vsel %vm27, %v22, 0.0
    %v34 = vadd.f32 %v32, %v33
    %35 = vadd.xlane.f32.xlu0 %v34
    %v36 = vpop.xlane.xlu0 %35
    %v37 = vmul.f32 %v36, 0.001953125
    %v40 = vunpack.c.l.s4 839922192
    %v41 = vunpack.c.0.s8 %v40
    %v42 = vperm.slane %v37, %v41
    %v44 = vsub.f32 %v12, %v42
    %v45 = vsub.f32 %v13, %v42
    %v46 = vmul.f32 %v44, %v44
    %v47 = vmul.f32 %v45, %v45
    %50 = vst [vmem:[#allocation1] ss:$2 sm:$0xff] %v46
    %v51 = vld.sshfl [vmem:[#allocation1] sm:$0xff pattern:$0x75316420]
    %v52 = vld.sshfl [vmem:[#allocation1 + $0x8] sm:$0xff pattern:$0x75316420]
    %s53 = scalar_lea.vmem [#allocation1], 16
    %54 = vst [vmem:[%s53] ss:$2 sm:$0xff] %v47
    %v55 = vld.sshfl [vmem:[#allocation1 + $0x10] sm:$0xff pattern:$0x75316420]
    %v56 = vld.sshfl [vmem:[#allocation1 + $0x18] sm:$0xff pattern:$0x75316420]
    %v61 = vsel %vm27, %v51, 0.0
    %v62 = vsel %vm27, %v52, 0.0
    %v63 = vadd.f32 %v61, %v62
    %v64 = vsel %vm27, %v55, 0.0
    %v65 = vadd.f32 %v63, %v64
    %v66 = vsel %vm27, %v56, 0.0
    %v67 = vadd.f32 %v65, %v66
    %68 = vadd.xlane.f32.xlu0 %v67
    %v69 = vpop.xlane.xlu0 %68
    %v70 = vmul.f32 %v69, 0.001953125
    %v71 = vadd.f32 %v70, 1e-05
    %v72 = vrsqrt.pop %v71
    %v73 = vmul.f32 %v72, %v71
    %v74 = vmul.f32 %v73, %v72
    %v75 = vmul.f32 0.5, %v74
    %v76 = vsub.f32 1.5, %v75
    %v77 = vmul.f32 %v72, %v76
    %vm78 = vweird.f32 %v71
    %vm79 = vweird.f32 %v72
    %vm80 = vmor %vm78, %vm79
    %v81 = vsel %vm80, %v72, %v77
    %v82 = vld [vmem:[%s1] sm:$0xf]
    %v83 = vld [vmem:[%s1 + $0x4] sm:$0xf]
    %v84 = vld [vmem:[%s1 + $0x8] sm:$0xf]
    %v85 = vld [vmem:[%s1 + $0xc] sm:$0xf]
    %v86 = vmul.f32 %v82, %v81
    %v87 = vmul.f32 %v83, %v81
    %89 = vset.pattern.permute.xlu0 0
    %90 = vperm.xlu0 %89, %v86
    %v91 = vpop.permute.xlu0 %90
    %93 = vset.pattern.permute.xlu0 0
    %94 = vperm.xlu0 %93, %v87
    %v95 = vpop.permute.xlu0 %94
    %v97 = vunpack.c.l.s4 839922192
    %v98 = vunpack.c.0.s8 %v97
    %v99 = vperm.slane %v91, %v98
    %v101 = vunpack.c.l.s4 839922192
    %v102 = vunpack.c.0.s8 %v101
    %v103 = vperm.slane %v95, %v102
    %v106 = vmul.f32 %v44, %v99
    %v107 = vmul.f32 %v45, %v103
    %109 = vset.pattern.permute.xlu0 0
    %110 = vperm.xlu0 %109, %v84
    %v111 = vpop.permute.xlu0 %110
    %113 = vset.pattern.permute.xlu0 0
    %114 = vperm.xlu0 %113, %v85
    %v115 = vpop.permute.xlu0 %114
    %v117 = vunpack.c.l.s4 839922192
    %v118 = vunpack.c.0.s8 %v117
    %v119 = vperm.slane %v111, %v118
    %v121 = vunpack.c.l.s4 839922192
    %v122 = vunpack.c.0.s8 %v121
    %v123 = vperm.slane %v115, %v122
    %v126 = vadd.f32 %v106, %v119
    %v127 = vadd.f32 %v107, %v123
    %128 = vst [vmem:[#allocation2] sm:$0xff] %v126
    %129 = vst [vmem:[#allocation2 + $0x8] sm:$0xff] %v127
    // Predicated region
    $region10: #{tpu_custom_call.1} parent=1 // pred_check
      _
    $region11: #{tpu_custom_call.1} parent=1 // pred_check_branch
      %131 = sbr.rel (0) target = $region13
    $region12: #{tpu_custom_call.1} parent=1 // pred_region
      %133 = vsyncadd [#allocation3], 0
      %s134 = sshll.u32 [#allocation2], 4
      %s135 = int_to_ptr.vmem [resolvable:$true] %s134
      %s136 = sshll.u32 %s2, 4
      %s137 = int_to_ptr.hbm [resolvable:$true] %s136
      %142 = dma.vmem_to_hbm [thread:$0]  %s135, 256, %s137, [#allocation3], 128, 128, 8
    $region13: #{tpu_custom_call.1} parent=1 // pred_fallthru
      _
    // Predicated region
    $region14: #{tpu_custom_call.1} parent=1 // pred_check
      _
    $region15: #{tpu_custom_call.1} parent=1 // pred_check_branch
      %144 = sbr.rel (0) target = $region17
    $region16: #{tpu_custom_call.1} parent=1 // pred_region
      %146 = dma.done [#allocation3], 256
    $region17: #{tpu_custom_call.1} parent=1 // pred_fallthru
      _
    %147 = vsyncpa [#allocation3], 1

</llo_original>
